<compile_context>
chip_gen: v7x
topology: tpu7x:2x2x1
jax: 0.10.0
libtpu: 0.0.40
codegen_flags: <defaults>
</compile_context>

<pallas_src>
import functools

import jax
import jax.numpy as jnp
from jax.experimental import pallas as pl
from jax.experimental.pallas import tpu as pltpu

HIDDEN = 128


def _round_up(n, m):
    return ((n + m - 1) // m) * m


def _network_kernel(x_ref, wf_ref, bf_ref, wh_ref, bh_ref, wq_ref, bq_ref,
                    grp_ref, grpt_ref, sup_ref, q_ref):
    mxu_dtype = wf_ref.dtype

    # feature_layer: Linear(in_dim, 128) + ReLU.  x arrives in f32; the
    # narrowing cast to the MXU dtype is done here (VPU, hidden under the
    # matmul slots) instead of a separate wrapper-side XLA pass over HBM.
    x = x_ref[...].astype(mxu_dtype)
    feat = jnp.dot(x, wf_ref[...], preferred_element_type=jnp.float32) + bf_ref[...]
    feat = jnp.maximum(feat, 0.0)

    # fused advantage/value hidden layers: (B,128) @ (128,256) + ReLU
    hidden = jnp.dot(feat.astype(mxu_dtype), wh_ref[...],
                     preferred_element_type=jnp.float32) + bh_ref[...]
    hidden = jnp.maximum(hidden, 0.0)

    # fused heads + dueling combine: q_atoms = hidden @ W_q + b_q
    # (W_q already contains wa2 @ (I - mean_over_actions) and the value head
    #  tiled across actions, so this IS val + adv - adv.mean(actions).)
    q_atoms = jnp.dot(hidden.astype(mxu_dtype), wq_ref[...],
                      preferred_element_type=jnp.float32) + bq_ref[...]

    # Per-action-group softmax, dense on the (B, out_dim*atom_dim) tile.
    # A row-wide max is a constant shift within every group (softmax is
    # shift-invariant); the denominator is guarded so a group whose logits all
    # underflow gives 0 (then clamped to 0.001) instead of NaN.
    m = jnp.max(q_atoms, axis=-1, keepdims=True)
    e = jnp.exp(q_atoms - m)
    # segmented group-sum + broadcast-back: two skinny matmuls,
    # O(2*oa*out_dim)/row instead of a dense (oa,oa) indicator matmul.
    gsum = jnp.dot(e, grp_ref[...], preferred_element_type=jnp.float32)
    denom = jnp.dot(gsum, grpt_ref[...], preferred_element_type=jnp.float32)
    denom = jnp.maximum(denom, 1e-30)
    dist = e * pl.reciprocal(denom, approx=True)
    dist = jnp.maximum(dist, 0.001)                      # .clamp(min=0.001)

    # Expectation vs. support: Q = dist @ blockdiag(support), one dense store.
    # TODO(synk): if profiling shows the masked 4/128-lane store binding,
    # present a lane-dense output slab via a zero-byte wrapper reshape.
    q_ref[...] = jnp.dot(dist, sup_ref[...],
                         preferred_element_type=jnp.float32).astype(q_ref.dtype)


def prepare_params(p, support, *, out_dim, atom_dim, mxu_dtype=jnp.bfloat16):
    """Init-time weight fusion into the kernel layout.

    Call ONCE and reuse the returned device arrays — the centering matmul /
    concat / tile / cast chain must not sit on the per-forward path.
    """
    oa = out_dim * atom_dim

    # hidden layers of both streams side by side: (128, 256)
    w_h = jnp.concatenate([p["wa1"], p["wv1"]], axis=1)
    b_h = jnp.concatenate([p["ba1"], p["bv1"]], axis=1)

    # mean-over-actions as a linear map on the flat (out_dim*atom_dim) axis
    atom_of = jnp.arange(oa) % atom_dim
    m_mean = (atom_of[:, None] == atom_of[None, :]).astype(jnp.float32) / out_dim
    center = jnp.eye(oa, dtype=jnp.float32) - m_mean     # adv -> adv - mean_a

    wa2c = p["wa2"] @ center
    ba2c = p["ba2"] @ center
    wv2t = jnp.tile(p["wv2"], (1, out_dim))              # value broadcast
    bv2t = jnp.tile(p["bv2"], (1, out_dim))

    w_q = jnp.concatenate([wa2c, wv2t], axis=0)          # (2*HIDDEN, oa)
    b_q = ba2c + bv2t                                    # (1, oa)

    # compact group indicator for the segmented softmax denominator
    group_of = jnp.arange(oa) // atom_dim
    grp = (group_of[:, None] == jnp.arange(out_dim)[None, :]).astype(jnp.float32)
    grp_t = grp.T                                        # (out_dim, oa)

    # block-diagonal support for the expectation matmul: (oa, out_dim)
    sup_flat = jnp.tile(support.reshape(-1).astype(jnp.float32), out_dim)
    sup_bd = grp * sup_flat[:, None]

    return (p["wf"].astype(mxu_dtype), p["bf"].astype(jnp.float32),
            w_h.astype(mxu_dtype), b_h.astype(jnp.float32),
            w_q.astype(mxu_dtype), b_q.astype(jnp.float32),
            grp, grp_t, sup_bd)


def network_forward(x, fused, *, out_dim, atom_dim,
                    tile_b=1024, min_grid_steps=2,
                    vmem_limit_bytes=48 * 1024 * 1024):
    """Pallas implementation of Network.forward(state) from fused params."""
    batch, in_dim = x.shape
    oa = out_dim * atom_dim

    # --- batch tile selection -------------------------------------------
    # Big tiles amortize the ~0.35us per-grid-step overhead of this
    # HBM-read-bound kernel; the min_grid_steps cap keeps >= 2 grid steps so
    # the "parallel" batch axis can shard across both v7x TensorCores.
    tile_b = min(tile_b, _round_up(batch, 8))
    if min_grid_steps > 1:
        tile_b = min(tile_b, _round_up(-(-batch // min_grid_steps), 8))
    tile_b = max(tile_b, 8)
    padded = _round_up(batch, tile_b)
    if padded != batch:
        x = jnp.pad(x, ((0, padded - batch), (0, 0)))

    const = lambda i: (0, 0)     # weights stay VMEM-resident across the grid
    in_specs = [
        pl.BlockSpec((tile_b, in_dim), lambda i: (i, 0)),        # x
        pl.BlockSpec((in_dim, HIDDEN), const),                   # wf
        pl.BlockSpec((1, HIDDEN), const),                        # bf
        pl.BlockSpec((HIDDEN, 2 * HIDDEN), const),               # w_h
        pl.BlockSpec((1, 2 * HIDDEN), const),                    # b_h
        pl.BlockSpec((2 * HIDDEN, oa), const),                   # w_q  (fixed)
        pl.BlockSpec((1, oa), const),                            # b_q
        pl.BlockSpec((oa, out_dim), const),                      # group indicator
        pl.BlockSpec((out_dim, oa), const),                      # indicator^T
        pl.BlockSpec((oa, out_dim), const),                      # blockdiag support
    ]
    out_specs = pl.BlockSpec((tile_b, out_dim), lambda i: (i, 0))

    weight_bytes = sum(int(a.size) * jnp.dtype(a.dtype).itemsize for a in fused)
    cost = pl.CostEstimate(
        flops=2 * padded * (in_dim * HIDDEN + HIDDEN * 2 * HIDDEN
                            + 2 * HIDDEN * oa + 3 * oa * out_dim),
        transcendentals=padded * oa,
        bytes_accessed=padded * (in_dim + out_dim) * 4 + weight_bytes)

    q = pl.pallas_call(
        _network_kernel,
        out_shape=jax.ShapeDtypeStruct((padded, out_dim), jnp.float32),
        grid=(padded // tile_b,),
        in_specs=in_specs,
        out_specs=out_specs,
        compiler_params=pltpu.CompilerParams(
            dimension_semantics=("parallel",),
            vmem_limit_bytes=vmem_limit_bytes),
        cost_estimate=cost,
    )(x, *fused)
    return q[:batch]


def reference_forward(x, p, support, *, out_dim, atom_dim):
    """Pure-JAX reference mirroring the PyTorch module exactly."""
    feat = jax.nn.relu(x @ p["wf"] + p["bf"])
    adv = jax.nn.relu(feat @ p["wa1"] + p["ba1"]) @ p["wa2"] + p["ba2"]
    val = jax.nn.relu(feat @ p["wv1"] + p["bv1"]) @ p["wv2"] + p["bv2"]
    adv = adv.reshape(-1, out_dim, atom_dim)
    val = val.reshape(-1, 1, atom_dim)
    q_atoms = val + adv - adv.mean(axis=1, keepdims=True)
    dist = jax.nn.softmax(q_atoms, axis=-1)
    dist = jnp.maximum(dist, 0.001)
    return jnp.sum(dist * support.reshape(1, 1, atom_dim), axis=2)


def init_params(key, in_dim, out_dim, atom_dim):
    """Deterministic synthetic parameters (weights pre-transposed to (in, out))."""
    def linear(k, fan_in, fan_out):
        kw, kb = jax.random.split(k)
        bound = 1.0 / jnp.sqrt(fan_in)
        w = jax.random.uniform(kw, (fan_in, fan_out), jnp.float32, -bound, bound)
        b = jax.random.uniform(kb, (1, fan_out), jnp.float32, -bound, bound)
        return w, b

    keys = jax.random.split(key, 5)
    wf, bf = linear(keys[0], in_dim, HIDDEN)
    wa1, ba1 = linear(keys[1], HIDDEN, HIDDEN)
    wa2, ba2 = linear(keys[2], HIDDEN, out_dim * atom_dim)
    wv1, bv1 = linear(keys[3], HIDDEN, HIDDEN)
    wv2, bv2 = linear(keys[4], HIDDEN, atom_dim)
    return dict(wf=wf, bf=bf, wa1=wa1, ba1=ba1, wa2=wa2, ba2=ba2,
                wv1=wv1, bv1=bv1, wv2=wv2, bv2=bv2)


if __name__ == "__main__":
    in_dim, out_dim, atom_dim = 32, 4, 8
    batch = 48                      # exercises a multi-step batch grid

    key = jax.random.PRNGKey(0)
    k_params, k_x = jax.random.split(key)
    params = init_params(k_params, in_dim, out_dim, atom_dim)
    x = jax.random.normal(k_x, (batch, in_dim), jnp.float32)
    support = jnp.linspace(-10.0, 10.0, atom_dim, dtype=jnp.float32)

    q_ref = reference_forward(x, params, support, out_dim=out_dim, atom_dim=atom_dim)

    # f32 MXU path (exact math up to approx-reciprocal / reassociation),
    # explicit small tile to exercise a 3-step grid.
    fused_f32 = prepare_params(params, support, out_dim=out_dim,
                               atom_dim=atom_dim, mxu_dtype=jnp.float32)
    fwd_f32 = jax.jit(functools.partial(network_forward, out_dim=out_dim,
                                        atom_dim=atom_dim, tile_b=16))
    q = jax.block_until_ready(fwd_f32(x, fused_f32))
    assert q.shape == (batch, out_dim)
    assert jnp.allclose(q, q_ref, atol=2e-2, rtol=2e-2), (q, q_ref)

    # bf16-weight default path (v6e/v7x): f32 accumulate + f32 epilogue,
    # default (large, clamped) tile with >= 2 grid steps.
    fused_bf16 = prepare_params(params, support, out_dim=out_dim,
                                atom_dim=atom_dim, mxu_dtype=jnp.bfloat16)
    fwd_bf16 = jax.jit(functools.partial(network_forward, out_dim=out_dim,
                                         atom_dim=atom_dim))
    q_bf = jax.block_until_ready(fwd_bf16(x, fused_bf16))
    assert q_bf.shape == (batch, out_dim)
    assert bool(jnp.all(jnp.isfinite(q_bf)))
    assert float(jnp.max(jnp.abs(q_bf - q_ref))) < 0.25, (q_bf, q_ref)

    print("KERNEL_OK")
</pallas_src>

<mosaic_0001>
module attributes {stable_mosaic.version = 11 : i64} {
  func.func @_network_kernel(%arg0: i32, %arg1: memref<16x32xf32, #tpu.memory_space<vmem>>, %arg2: memref<32x128xf32, #tpu.memory_space<vmem>>, %arg3: memref<1x128xf32, #tpu.memory_space<vmem>>, %arg4: memref<128x256xf32, #tpu.memory_space<vmem>>, %arg5: memref<1x256xf32, #tpu.memory_space<vmem>>, %arg6: memref<256x32xf32, #tpu.memory_space<vmem>>, %arg7: memref<1x32xf32, #tpu.memory_space<vmem>>, %arg8: memref<32x4xf32, #tpu.memory_space<vmem>>, %arg9: memref<4x32xf32, #tpu.memory_space<vmem>>, %arg10: memref<32x4xf32, #tpu.memory_space<vmem>>, %arg11: memref<16x4xf32, #tpu.memory_space<vmem>>) attributes {dimension_semantics = [#tpu.dimension_semantics<parallel>], iteration_bounds = array<i64: 3>, scalar_prefetch = 0 : i64, scratch_operands = 0 : i64, tpu.core_type = #tpu.core_type<tc>, window_params = [{transform_indices = @transform_0, window_bounds = array<i64: 16, 32>}, {pipeline_mode = #tpu.pipeline_mode<synchronous>, transform_indices = @transform_1, window_bounds = array<i64: 32, 128>}, {pipeline_mode = #tpu.pipeline_mode<synchronous>, transform_indices = @transform_2, window_bounds = array<i64: 1, 128>}, {pipeline_mode = #tpu.pipeline_mode<synchronous>, transform_indices = @transform_3, window_bounds = array<i64: 128, 256>}, {pipeline_mode = #tpu.pipeline_mode<synchronous>, transform_indices = @transform_4, window_bounds = array<i64: 1, 256>}, {pipeline_mode = #tpu.pipeline_mode<synchronous>, transform_indices = @transform_5, window_bounds = array<i64: 256, 32>}, {pipeline_mode = #tpu.pipeline_mode<synchronous>, transform_indices = @transform_6, window_bounds = array<i64: 1, 32>}, {pipeline_mode = #tpu.pipeline_mode<synchronous>, transform_indices = @transform_7, window_bounds = array<i64: 32, 4>}, {pipeline_mode = #tpu.pipeline_mode<synchronous>, transform_indices = @transform_8, window_bounds = array<i64: 4, 32>}, {pipeline_mode = #tpu.pipeline_mode<synchronous>, transform_indices = @transform_9, window_bounds = array<i64: 32, 4>}, {transform_indices = @transform_10, window_bounds = array<i64: 16, 4>}]} {
    %c0 = arith.constant 0 : index
    %c0_0 = arith.constant 0 : index
    %0 = vector.load %arg1[%c0, %c0_0] : memref<16x32xf32, #tpu.memory_space<vmem>>, vector<16x32xf32>
    %c0_1 = arith.constant 0 : index
    %c0_2 = arith.constant 0 : index
    %1 = vector.load %arg2[%c0_1, %c0_2] : memref<32x128xf32, #tpu.memory_space<vmem>>, vector<32x128xf32>
    %cst = arith.constant dense<0.000000e+00> : vector<16x128xf32>
    %2 = tpu.matmul %0, %1, %cst {dimension_numbers = #tpu.dot_dimension_numbers<[1], [0], [0], [1], [0, 0, 1, 1], [], []>} : vector<16x32xf32>, vector<32x128xf32>, vector<16x128xf32> -> vector<16x128xf32>
    %c0_3 = arith.constant 0 : index
    %c0_4 = arith.constant 0 : index
    %3 = vector.load %arg3[%c0_3, %c0_4] : memref<1x128xf32, #tpu.memory_space<vmem>>, vector<1x128xf32>
    %4 = vector.broadcast %3 : vector<1x128xf32> to vector<16x128xf32>
    %5 = arith.addf %2, %4 : vector<16x128xf32>
    %cst_5 = arith.constant 0.000000e+00 : f32
    %6 = vector.broadcast %cst_5 : f32 to vector<16x128xf32>
    %7 = arith.maximumf %5, %6 : vector<16x128xf32>
    %c0_6 = arith.constant 0 : index
    %c0_7 = arith.constant 0 : index
    %8 = vector.load %arg4[%c0_6, %c0_7] : memref<128x256xf32, #tpu.memory_space<vmem>>, vector<128x256xf32>
    %cst_8 = arith.constant dense<0.000000e+00> : vector<16x256xf32>
    %9 = tpu.matmul %7, %8, %cst_8 {dimension_numbers = #tpu.dot_dimension_numbers<[1], [0], [0], [1], [0, 0, 1, 1], [], []>} : vector<16x128xf32>, vector<128x256xf32>, vector<16x256xf32> -> vector<16x256xf32>
    %c0_9 = arith.constant 0 : index
    %c0_10 = arith.constant 0 : index
    %10 = vector.load %arg5[%c0_9, %c0_10] : memref<1x256xf32, #tpu.memory_space<vmem>>, vector<1x256xf32>
    %11 = vector.broadcast %10 : vector<1x256xf32> to vector<16x256xf32>
    %12 = arith.addf %9, %11 : vector<16x256xf32>
    %cst_11 = arith.constant 0.000000e+00 : f32
    %13 = vector.broadcast %cst_11 : f32 to vector<16x256xf32>
    %14 = arith.maximumf %12, %13 : vector<16x256xf32>
    %c0_12 = arith.constant 0 : index
    %c0_13 = arith.constant 0 : index
    %15 = vector.load %arg6[%c0_12, %c0_13] : memref<256x32xf32, #tpu.memory_space<vmem>>, vector<256x32xf32>
    %cst_14 = arith.constant dense<0.000000e+00> : vector<16x32xf32>
    %16 = tpu.matmul %14, %15, %cst_14 {dimension_numbers = #tpu.dot_dimension_numbers<[1], [0], [0], [1], [0, 0, 1, 1], [], []>} : vector<16x256xf32>, vector<256x32xf32>, vector<16x32xf32> -> vector<16x32xf32>
    %c0_15 = arith.constant 0 : index
    %c0_16 = arith.constant 0 : index
    %17 = vector.load %arg7[%c0_15, %c0_16] : memref<1x32xf32, #tpu.memory_space<vmem>>, vector<1x32xf32>
    %18 = vector.broadcast %17 : vector<1x32xf32> to vector<16x32xf32>
    %19 = arith.addf %16, %18 : vector<16x32xf32>
    %cst_17 = arith.constant dense<0xFF800000> : vector<16xf32>
    %20 = vector.multi_reduction <maximumf>, %19, %cst_17 [1] : vector<16x32xf32> to vector<16xf32>
    %21 = vector.shape_cast %20 : vector<16xf32> to vector<16x1xf32>
    %22 = vector.broadcast %21 : vector<16x1xf32> to vector<16x32xf32>
    %23 = arith.subf %19, %22 : vector<16x32xf32>
    %24 = math.exp %23 : vector<16x32xf32>
    %c0_18 = arith.constant 0 : index
    %c0_19 = arith.constant 0 : index
    %25 = vector.load %arg8[%c0_18, %c0_19] : memref<32x4xf32, #tpu.memory_space<vmem>>, vector<32x4xf32>
    %cst_20 = arith.constant dense<0.000000e+00> : vector<16x4xf32>
    %26 = tpu.matmul %24, %25, %cst_20 {dimension_numbers = #tpu.dot_dimension_numbers<[1], [0], [0], [1], [0, 0, 1, 1], [], []>} : vector<16x32xf32>, vector<32x4xf32>, vector<16x4xf32> -> vector<16x4xf32>
    %c0_21 = arith.constant 0 : index
    %c0_22 = arith.constant 0 : index
    %27 = vector.load %arg9[%c0_21, %c0_22] : memref<4x32xf32, #tpu.memory_space<vmem>>, vector<4x32xf32>
    %cst_23 = arith.constant dense<0.000000e+00> : vector<16x32xf32>
    %28 = tpu.matmul %26, %27, %cst_23 {dimension_numbers = #tpu.dot_dimension_numbers<[1], [0], [0], [1], [0, 0, 1, 1], [], []>} : vector<16x4xf32>, vector<4x32xf32>, vector<16x32xf32> -> vector<16x32xf32>
    %cst_24 = arith.constant 1.000000e-30 : f32
    %29 = vector.broadcast %cst_24 : f32 to vector<16x32xf32>
    %30 = arith.maximumf %28, %29 : vector<16x32xf32>
    %31 = tpu.reciprocal %30 {approx = true} : vector<16x32xf32> -> vector<16x32xf32>
    %32 = arith.mulf %24, %31 : vector<16x32xf32>
    %cst_25 = arith.constant 1.000000e-03 : f32
    %33 = vector.broadcast %cst_25 : f32 to vector<16x32xf32>
    %34 = arith.maximumf %32, %33 : vector<16x32xf32>
    %c0_26 = arith.constant 0 : index
    %c0_27 = arith.constant 0 : index
    %35 = vector.load %arg10[%c0_26, %c0_27] : memref<32x4xf32, #tpu.memory_space<vmem>>, vector<32x4xf32>
    %cst_28 = arith.constant dense<0.000000e+00> : vector<16x4xf32>
    %36 = tpu.matmul %34, %35, %cst_28 {dimension_numbers = #tpu.dot_dimension_numbers<[1], [0], [0], [1], [0, 0, 1, 1], [], []>} : vector<16x32xf32>, vector<32x4xf32>, vector<16x4xf32> -> vector<16x4xf32>
    %c0_29 = arith.constant 0 : index
    %c0_30 = arith.constant 0 : index
    %37 = vector.load %arg11[%c0_29, %c0_30] : memref<16x4xf32, #tpu.memory_space<vmem>>, vector<16x4xf32>
    tpu.vector_store %arg11[%c0_29, %c0_30], %36 {strides = array<i32>} : memref<16x4xf32, #tpu.memory_space<vmem>>, vector<16x4xf32>,
    return
  }
  func.func @transform_0(%arg0: i32) -> (i32, i32) {
    %c0_i32 = arith.constant 0 : i32
    %c0_i32_0 = arith.constant 0 : i32
    return %arg0, %c0_i32 : i32, i32
  }
  func.func @transform_1(%arg0: i32) -> (i32, i32) {
    %c0_i32 = arith.constant 0 : i32
    %c0_i32_0 = arith.constant 0 : i32
    %c0_i32_1 = arith.constant 0 : i32
    return %c0_i32, %c0_i32_0 : i32, i32
  }
  func.func @transform_2(%arg0: i32) -> (i32, i32) {
    %c0_i32 = arith.constant 0 : i32
    %c0_i32_0 = arith.constant 0 : i32
    %c0_i32_1 = arith.constant 0 : i32
    return %c0_i32, %c0_i32_0 : i32, i32
  }
  func.func @transform_3(%arg0: i32) -> (i32, i32) {
    %c0_i32 = arith.constant 0 : i32
    %c0_i32_0 = arith.constant 0 : i32
    %c0_i32_1 = arith.constant 0 : i32
    return %c0_i32, %c0_i32_0 : i32, i32
  }
  func.func @transform_4(%arg0: i32) -> (i32, i32) {
    %c0_i32 = arith.constant 0 : i32
    %c0_i32_0 = arith.constant 0 : i32
    %c0_i32_1 = arith.constant 0 : i32
    return %c0_i32, %c0_i32_0 : i32, i32
  }
  func.func @transform_5(%arg0: i32) -> (i32, i32) {
    %c0_i32 = arith.constant 0 : i32
    %c0_i32_0 = arith.constant 0 : i32
    %c0_i32_1 = arith.constant 0 : i32
    return %c0_i32, %c0_i32_0 : i32, i32
  }
  func.func @transform_6(%arg0: i32) -> (i32, i32) {
    %c0_i32 = arith.constant 0 : i32
    %c0_i32_0 = arith.constant 0 : i32
    %c0_i32_1 = arith.constant 0 : i32
    return %c0_i32, %c0_i32_0 : i32, i32
  }
  func.func @transform_7(%arg0: i32) -> (i32, i32) {
    %c0_i32 = arith.constant 0 : i32
    %c0_i32_0 = arith.constant 0 : i32
    %c0_i32_1 = arith.constant 0 : i32
    return %c0_i32, %c0_i32_0 : i32, i32
  }
  func.func @transform_8(%arg0: i32) -> (i32, i32) {
    %c0_i32 = arith.constant 0 : i32
    %c0_i32_0 = arith.constant 0 : i32
    %c0_i32_1 = arith.constant 0 : i32
    return %c0_i32, %c0_i32_0 : i32, i32
  }
  func.func @transform_9(%arg0: i32) -> (i32, i32) {
    %c0_i32 = arith.constant 0 : i32
    %c0_i32_0 = arith.constant 0 : i32
    %c0_i32_1 = arith.constant 0 : i32
    return %c0_i32, %c0_i32_0 : i32, i32
  }
  func.func @transform_10(%arg0: i32) -> (i32, i32) {
    %c0_i32 = arith.constant 0 : i32
    %c0_i32_0 = arith.constant 0 : i32
    return %arg0, %c0_i32 : i32, i32
  }
}

</mosaic_0001>

<llo_original>
// kernel: network_forward.1
$region0: #{network_forward.1}
  #allocation0 [shape = 'u32[]', space=smem, size = 0x4, offset = 0x4, fixed_abs, tag = 'smem constant byte address 0x4 - core index']
  #allocation1 [shape = 'u32[144,128]{1,0:T(1,128)}', space=vmem, size = 0x12000, scoped, tag = 'internal scratch']
  %s0 = inlined_call_operand.vmem [shape: f32[48,32], index: 0, kind: input, shape index: {}]
  %s1 = inlined_call_operand.vmem [shape: f32[32,128], index: 1, kind: input, shape index: {}]
  %s2 = inlined_call_operand.vmem [shape: f32[1,128], index: 2, kind: input, shape index: {}]
  %s3 = inlined_call_operand.vmem [shape: f32[128,256], index: 3, kind: input, shape index: {}]
  %s4 = inlined_call_operand.vmem [shape: f32[1,256], index: 4, kind: input, shape index: {}]
  %s5 = inlined_call_operand.vmem [shape: f32[256,32], index: 5, kind: input, shape index: {}]
  %s6 = inlined_call_operand.vmem [shape: f32[1,32], index: 6, kind: input, shape index: {}]
  %s7 = inlined_call_operand.vmem [shape: f32[32,4], index: 7, kind: input, shape index: {}]
  %s8 = inlined_call_operand.vmem [shape: f32[4,32], index: 8, kind: input, shape index: {}]
  %s9 = inlined_call_operand.vmem [shape: f32[32,4], index: 9, kind: input, shape index: {}]
  %s10 = inlined_call_operand.vmem [shape: f32[48,4], index: 10, kind: output, shape index: {}]
  %s11 = sld [smem:[#allocation0]]
  $region73: #{network_forward.1} parent=0
    _
  %s13 = ssub.s32 1, %s11
  %s14 = scalar_select 0, %s13, %s11
  loop: start=0, step=1, limit=5
  $region2: #{network_forward.1} parent=0 // loop_pre_header
    _
  $region3: #{network_forward.1} parent=0 // loop_header
    %s16 = sphi 0, %s20
    %p17 = scmp.ge.s32.totalorder %s16, 5
    %s26 = sphi 0, %s28
    %s29 = sphi 0, %s26
    %s30 = sphi 0, %s29
    %s46 = sphi 0, %s30
    %s50 = sphi 0, %s50
    %s52 = sphi 0, %s50
    %s53 = sphi 0, %s52
    %s67 = sphi 0, %s53
    %s71 = sphi 0, %s71
    %s73 = sphi 0, %s71
    %s74 = sphi 0, %s73
    %s88 = sphi 0, %s74
    %s92 = sphi 0, %s92
    %s94 = sphi 0, %s92
    %s95 = sphi 0, %s94
    %s109 = sphi 0, %s95
    %s113 = sphi 0, %s113
    %s115 = sphi 0, %s113
    %s116 = sphi 0, %s115
    %s130 = sphi 0, %s116
    %s134 = sphi 0, %s134
    %s136 = sphi 0, %s134
    %s137 = sphi 0, %s136
    %s151 = sphi 0, %s137
    %s155 = sphi 0, %s155
    %s157 = sphi 0, %s155
    %s158 = sphi 0, %s157
    %s172 = sphi 0, %s158
    %s176 = sphi 0, %s176
    %s178 = sphi 0, %s176
    %s179 = sphi 0, %s178
    %s193 = sphi 0, %s179
    %s197 = sphi 0, %s197
    %s199 = sphi 0, %s197
    %s200 = sphi 0, %s199
    %s214 = sphi 0, %s200
    %s218 = sphi 0, %s218
    %s220 = sphi 0, %s218
    %s221 = sphi 0, %s220
    %s235 = sphi 0, %s221
    %s241 = sphi 0, %s243
    %s244 = sphi 0, %s241
    %s245 = sphi 0, %s244
    %s261 = sphi 0, %s245
  $region4: #{network_forward.1} parent=0 // loop_header_branch
    %19 = sbr.rel (%p17) target = $region8
  $region5: #{network_forward.1} parent=0 // loop_body
    %s21 = ssub.s32 %s16, 1
    %s22 = ssub.s32 %s16, 2
    %s23 = sadd.s32 %s16, 1
    %s24 = ssub.s32 %s16, %s23
    %p25 = scmp.eq.s32.totalorder %s24, 0
    %s27 = sadd.s32 %s26, 1
    %s28 = scalar_select %p25, %s26, %s27
    %p31 = pneg %p25
    %p32 = scmp.eq.s32.totalorder %s16, 2
    %p33 = por %p31, %p32
    %p34 = scmp.ne.s32.totalorder %s26, %s29
    %p35 = scmp.eq.s32.totalorder %s16, 0
    %p36 = por %p34, %p35
    %p37 = scmp.ne.s32.totalorder %s26, %s29
    %p38 = scmp.eq.s32.totalorder %s21, 2
    %p39 = por %p37, %p38
    %p40 = scmp.ne.s32.totalorder %s29, %s30
    %p41 = scmp.eq.s32.totalorder %s21, 0
    %p42 = por %p40, %p41
    %p43 = scmp.ne.s32.totalorder %s29, %s30
    %p44 = scmp.eq.s32.totalorder %s22, 2
    %p45 = por %p43, %p44
    %p47 = scmp.ne.s32.totalorder %s30, %s46
    %p48 = scmp.eq.s32.totalorder %s22, 0
    %p49 = por %p47, %p48
    %s51 = sadd.s32 %s50, 1
    %p54 = scmp.eq.s32.totalorder %s16, 2
    %p55 = scmp.ne.s32.totalorder %s50, %s52
    %p56 = scmp.eq.s32.totalorder %s16, 0
    %p57 = por %p55, %p56
    %p58 = scmp.ne.s32.totalorder %s50, %s52
    %p59 = scmp.eq.s32.totalorder %s21, 2
    %p60 = por %p58, %p59
    %p61 = scmp.ne.s32.totalorder %s52, %s53
    %p62 = scmp.eq.s32.totalorder %s21, 0
    %p63 = por %p61, %p62
    %p64 = scmp.ne.s32.totalorder %s52, %s53
    %p65 = scmp.eq.s32.totalorder %s22, 2
    %p66 = por %p64, %p65
    %p68 = scmp.ne.s32.totalorder %s53, %s67
    %p69 = scmp.eq.s32.totalorder %s22, 0
    %p70 = por %p68, %p69
    %s72 = sadd.s32 %s71, 1
    %p75 = scmp.eq.s32.totalorder %s16, 2
    %p76 = scmp.ne.s32.totalorder %s71, %s73
    %p77 = scmp.eq.s32.totalorder %s16, 0
    %p78 = por %p76, %p77
    %p79 = scmp.ne.s32.totalorder %s71, %s73
    %p80 = scmp.eq.s32.totalorder %s21, 2
    %p81 = por %p79, %p80
    %p82 = scmp.ne.s32.totalorder %s73, %s74
    %p83 = scmp.eq.s32.totalorder %s21, 0
    %p84 = por %p82, %p83
    %p85 = scmp.ne.s32.totalorder %s73, %s74
    %p86 = scmp.eq.s32.totalorder %s22, 2
    %p87 = por %p85, %p86
    %p89 = scmp.ne.s32.totalorder %s74, %s88
    %p90 = scmp.eq.s32.totalorder %s22, 0
    %p91 = por %p89, %p90
    %s93 = sadd.s32 %s92, 1
    %p96 = scmp.eq.s32.totalorder %s16, 2
    %p97 = scmp.ne.s32.totalorder %s92, %s94
    %p98 = scmp.eq.s32.totalorder %s16, 0
    %p99 = por %p97, %p98
    %p100 = scmp.ne.s32.totalorder %s92, %s94
    %p101 = scmp.eq.s32.totalorder %s21, 2
    %p102 = por %p100, %p101
    %p103 = scmp.ne.s32.totalorder %s94, %s95
    %p104 = scmp.eq.s32.totalorder %s21, 0
    %p105 = por %p103, %p104
    %p106 = scmp.ne.s32.totalorder %s94, %s95
    %p107 = scmp.eq.s32.totalorder %s22, 2
    %p108 = por %p106, %p107
    %p110 = scmp.ne.s32.totalorder %s95, %s109
    %p111 = scmp.eq.s32.totalorder %s22, 0
    %p112 = por %p110, %p111
    %s114 = sadd.s32 %s113, 1
    %p117 = scmp.eq.s32.totalorder %s16, 2
    %p118 = scmp.ne.s32.totalorder %s113, %s115
    %p119 = scmp.eq.s32.totalorder %s16, 0
    %p120 = por %p118, %p119
    %p121 = scmp.ne.s32.totalorder %s113, %s115
    %p122 = scmp.eq.s32.totalorder %s21, 2
    %p123 = por %p121, %p122
    %p124 = scmp.ne.s32.totalorder %s115, %s116
    %p125 = scmp.eq.s32.totalorder %s21, 0
    %p126 = por %p124, %p125
    %p127 = scmp.ne.s32.totalorder %s115, %s116
    %p128 = scmp.eq.s32.totalorder %s22, 2
    %p129 = por %p127, %p128
    %p131 = scmp.ne.s32.totalorder %s116, %s130
    %p132 = scmp.eq.s32.totalorder %s22, 0
    %p133 = por %p131, %p132
    %s135 = sadd.s32 %s134, 1
    %p138 = scmp.eq.s32.totalorder %s16, 2
    %p139 = scmp.ne.s32.totalorder %s134, %s136
    %p140 = scmp.eq.s32.totalorder %s16, 0
    %p141 = por %p139, %p140
    %p142 = scmp.ne.s32.totalorder %s134, %s136
    %p143 = scmp.eq.s32.totalorder %s21, 2
    %p144 = por %p142, %p143
    %p145 = scmp.ne.s32.totalorder %s136, %s137
    %p146 = scmp.eq.s32.totalorder %s21, 0
    %p147 = por %p145, %p146
    %p148 = scmp.ne.s32.totalorder %s136, %s137
    %p149 = scmp.eq.s32.totalorder %s22, 2
    %p150 = por %p148, %p149
    %p152 = scmp.ne.s32.totalorder %s137, %s151
    %p153 = scmp.eq.s32.totalorder %s22, 0
    %p154 = por %p152, %p153
    %s156 = sadd.s32 %s155, 1
    %p159 = scmp.eq.s32.totalorder %s16, 2
    %p160 = scmp.ne.s32.totalorder %s155, %s157
    %p161 = scmp.eq.s32.totalorder %s16, 0
    %p162 = por %p160, %p161
    %p163 = scmp.ne.s32.totalorder %s155, %s157
    %p164 = scmp.eq.s32.totalorder %s21, 2
    %p165 = por %p163, %p164
    %p166 = scmp.ne.s32.totalorder %s157, %s158
    %p167 = scmp.eq.s32.totalorder %s21, 0
    %p168 = por %p166, %p167
    %p169 = scmp.ne.s32.totalorder %s157, %s158
    %p170 = scmp.eq.s32.totalorder %s22, 2
    %p171 = por %p169, %p170
    %p173 = scmp.ne.s32.totalorder %s158, %s172
    %p174 = scmp.eq.s32.totalorder %s22, 0
    %p175 = por %p173, %p174
    %s177 = sadd.s32 %s176, 1
    %p180 = scmp.eq.s32.totalorder %s16, 2
    %p181 = scmp.ne.s32.totalorder %s176, %s178
    %p182 = scmp.eq.s32.totalorder %s16, 0
    %p183 = por %p181, %p182
    %p184 = scmp.ne.s32.totalorder %s176, %s178
    %p185 = scmp.eq.s32.totalorder %s21, 2
    %p186 = por %p184, %p185
    %p187 = scmp.ne.s32.totalorder %s178, %s179
    %p188 = scmp.eq.s32.totalorder %s21, 0
    %p189 = por %p187, %p188
    %p190 = scmp.ne.s32.totalorder %s178, %s179
    %p191 = scmp.eq.s32.totalorder %s22, 2
    %p192 = por %p190, %p191
    %p194 = scmp.ne.s32.totalorder %s179, %s193
    %p195 = scmp.eq.s32.totalorder %s22, 0
    %p196 = por %p194, %p195
    %s198 = sadd.s32 %s197, 1
    %p201 = scmp.eq.s32.totalorder %s16, 2
    %p202 = scmp.ne.s32.totalorder %s197, %s199
    %p203 = scmp.eq.s32.totalorder %s16, 0
    %p204 = por %p202, %p203
    %p205 = scmp.ne.s32.totalorder %s197, %s199
    %p206 = scmp.eq.s32.totalorder %s21, 2
    %p207 = por %p205, %p206
    %p208 = scmp.ne.s32.totalorder %s199, %s200
    %p209 = scmp.eq.s32.totalorder %s21, 0
    %p210 = por %p208, %p209
    %p211 = scmp.ne.s32.totalorder %s199, %s200
    %p212 = scmp.eq.s32.totalorder %s22, 2
    %p213 = por %p211, %p212
    %p215 = scmp.ne.s32.totalorder %s200, %s214
    %p216 = scmp.eq.s32.totalorder %s22, 0
    %p217 = por %p215, %p216
    %s219 = sadd.s32 %s218, 1
    %p222 = scmp.eq.s32.totalorder %s16, 2
    %p223 = scmp.ne.s32.totalorder %s218, %s220
    %p224 = scmp.eq.s32.totalorder %s16, 0
    %p225 = por %p223, %p224
    %p226 = scmp.ne.s32.totalorder %s218, %s220
    %p227 = scmp.eq.s32.totalorder %s21, 2
    %p228 = por %p226, %p227
    %p229 = scmp.ne.s32.totalorder %s220, %s221
    %p230 = scmp.eq.s32.totalorder %s21, 0
    %p231 = por %p229, %p230
    %p232 = scmp.ne.s32.totalorder %s220, %s221
    %p233 = scmp.eq.s32.totalorder %s22, 2
    %p234 = por %p232, %p233
    %p236 = scmp.ne.s32.totalorder %s221, %s235
    %p237 = scmp.eq.s32.totalorder %s22, 0
    %p238 = por %p236, %p237
    %s239 = ssub.s32 %s16, %s23
    %p240 = scmp.eq.s32.totalorder %s239, 0
    %s242 = sadd.s32 %s241, 1
    %s243 = scalar_select %p240, %s241, %s242
    %p246 = pneg %p240
    %p247 = scmp.eq.s32.totalorder %s16, 2
    %p248 = por %p246, %p247
    %p249 = scmp.ne.s32.totalorder %s241, %s244
    %p250 = scmp.eq.s32.totalorder %s16, 0
    %p251 = por %p249, %p250
    %p252 = scmp.ne.s32.totalorder %s241, %s244
    %p253 = scmp.eq.s32.totalorder %s21, 2
    %p254 = por %p252, %p253
    %p255 = scmp.ne.s32.totalorder %s244, %s245
    %p256 = scmp.eq.s32.totalorder %s21, 0
    %p257 = por %p255, %p256
    %p258 = scmp.ne.s32.totalorder %s244, %s245
    %p259 = scmp.eq.s32.totalorder %s22, 2
    %p260 = por %p258, %p259
    %p262 = scmp.ne.s32.totalorder %s245, %s261
    %p263 = scmp.eq.s32.totalorder %s22, 0
    %p264 = por %p262, %p263
    %p265 = scmp.le.s32.totalorder 1, %s16
    %p266 = scmp.lt.s32.totalorder %s16, 4
    %p267 = pnand %p265, %p266
    %p268 = pneg %p267
    // Predicated region
    $region9: #{network_forward.1} parent=5 // pred_check
      _
    $region10: #{network_forward.1} parent=5 // pred_check_branch
      %270 = sbr.rel (%p267) target = $region12
    $region11: #{network_forward.1} parent=5 // pred_region
      %s271 = ssub.s32 %s16, 1
      // Predicated region
      $region13: #{network_forward.1} parent=11 // pred_check
        %p272 = pneg %p63
      $region14: #{network_forward.1} parent=11 // pred_check_branch
        %274 = sbr.rel (%p272) target = $region16
      $region15: #{network_forward.1} parent=11 // pred_region
        _
      $region16: #{network_forward.1} parent=11 // pred_fallthru
        _
      // Predicated region
      $region17: #{network_forward.1} parent=11 // pred_check
        %p275 = pneg %p84
      $region18: #{network_forward.1} parent=11 // pred_check_branch
        %277 = sbr.rel (%p275) target = $region20
      $region19: #{network_forward.1} parent=11 // pred_region
        _
      $region20: #{network_forward.1} parent=11 // pred_fallthru
        _
      // Predicated region
      $region21: #{network_forward.1} parent=11 // pred_check
        %p278 = pneg %p105
      $region22: #{network_forward.1} parent=11 // pred_check_branch
        %280 = sbr.rel (%p278) target = $region24
      $region23: #{network_forward.1} parent=11 // pred_region
        _
      $region24: #{network_forward.1} parent=11 // pred_fallthru
        _
      // Predicated region
      $region25: #{network_forward.1} parent=11 // pred_check
        %p281 = pneg %p126
      $region26: #{network_forward.1} parent=11 // pred_check_branch
        %283 = sbr.rel (%p281) target = $region28
      $region27: #{network_forward.1} parent=11 // pred_region
        _
      $region28: #{network_forward.1} parent=11 // pred_fallthru
        _
      // Predicated region
      $region29: #{network_forward.1} parent=11 // pred_check
        %p284 = pneg %p147
      $region30: #{network_forward.1} parent=11 // pred_check_branch
        %286 = sbr.rel (%p284) target = $region32
      $region31: #{network_forward.1} parent=11 // pred_region
        _
      $region32: #{network_forward.1} parent=11 // pred_fallthru
        _
      // Predicated region
      $region33: #{network_forward.1} parent=11 // pred_check
        %p287 = pneg %p168
      $region34: #{network_forward.1} parent=11 // pred_check_branch
        %289 = sbr.rel (%p287) target = $region36
      $region35: #{network_forward.1} parent=11 // pred_region
        _
      $region36: #{network_forward.1} parent=11 // pred_fallthru
        _
      // Predicated region
      $region37: #{network_forward.1} parent=11 // pred_check
        %p290 = pneg %p189
      $region38: #{network_forward.1} parent=11 // pred_check_branch
        %292 = sbr.rel (%p290) target = $region40
      $region39: #{network_forward.1} parent=11 // pred_region
        _
      $region40: #{network_forward.1} parent=11 // pred_fallthru
        _
      // Predicated region
      $region41: #{network_forward.1} parent=11 // pred_check
        %p293 = pneg %p210
      $region42: #{network_forward.1} parent=11 // pred_check_branch
        %295 = sbr.rel (%p293) target = $region44
      $region43: #{network_forward.1} parent=11 // pred_region
        _
      $region44: #{network_forward.1} parent=11 // pred_fallthru
        _
      // Predicated region
      $region45: #{network_forward.1} parent=11 // pred_check
        %p296 = pneg %p231
      $region46: #{network_forward.1} parent=11 // pred_check_branch
        %298 = sbr.rel (%p296) target = $region48
      $region47: #{network_forward.1} parent=11 // pred_region
        _
      $region48: #{network_forward.1} parent=11 // pred_fallthru
        _
    $region12: #{network_forward.1} parent=5 // pred_fallthru
      _
    %p299 = scmp.lt.s32.totalorder %s16, 3
    // Predicated region
    $region49: #{network_forward.1} parent=5 // pred_check
      %p300 = pneg %p299
    $region50: #{network_forward.1} parent=5 // pred_check_branch
      %302 = sbr.rel (%p300) target = $region52
    $region51: #{network_forward.1} parent=5 // pred_region
      // Predicated region
      $region53: #{network_forward.1} parent=51 // pred_check
        %p303 = pneg %p36
      $region54: #{network_forward.1} parent=51 // pred_check_branch
        %305 = sbr.rel (%p303) target = $region56
      $region55: #{network_forward.1} parent=51 // pred_region
        %s306 = smul.u32 2, %s16
        %p307 = scmp.lt.s32.totalorder %s306, 5
        %s308 = scalar_select %p307, %s306, 5
        %s309 = smul.addr %s308, 8
        %s310 = scalar_lea.vmem %s0, %s309
        %s311 = smul.u32 2, %s16
      $region56: #{network_forward.1} parent=51 // pred_fallthru
        _
    $region52: #{network_forward.1} parent=5 // pred_fallthru
      _
    %p312 = scmp.le.s32.totalorder 1, %s16
    %p313 = scmp.lt.s32.totalorder %s16, 4
    %p314 = pnand %p312, %p313
    %p315 = pneg %p314
    // Predicated region
    $region57: #{network_forward.1} parent=5 // pred_check
      _
    $region58: #{network_forward.1} parent=5 // pred_check_branch
      %317 = sbr.rel (%p314) target = $region60
    $region59: #{network_forward.1} parent=5 // pred_region
      %s318 = ssub.s32 %s16, 1
      %s319 = smul.u32 2, %s21
      %p320 = scmp.lt.s32.totalorder %s319, 5
      %s321 = scalar_select %p320, %s319, 5
      %s322 = smul.addr %s321, 8
      %s323 = scalar_lea.vmem %s0, %s322
      %p324 = pneg %p42
      %p325 = pneg %p39
      %p326 = pneg %p63
      %p327 = pneg %p60
      %p328 = pneg %p84
      %p329 = pneg %p81
      %p330 = pneg %p105
      %p331 = pneg %p102
      %p332 = pneg %p126
      %p333 = pneg %p123
      %p334 = pneg %p147
      %p335 = pneg %p144
      %p336 = pneg %p168
      %p337 = pneg %p165
      %p338 = pneg %p189
      %p339 = pneg %p186
      %p340 = pneg %p210
      %p341 = pneg %p207
      %p342 = pneg %p231
      %p343 = pneg %p228
      %p344 = pneg %p257
      %p345 = pneg %p254
      %s346 = smul.u32 2, %s21
      %p347 = scmp.lt.s32.totalorder %s346, 5
      %s348 = scalar_select %p347, %s346, 5
      %s349 = smul.addr %s348, 8
      %s350 = scalar_lea.vmem %s10, %s349
      %s351 = smul.u32 2, %s21
      %p352 = scmp.lt.s32.totalorder %s351, 5
      %s353 = scalar_select %p352, %s351, 5
      %s354 = smul.addr %s353, 8
      %s355 = scalar_lea.vmem %s0, %s354
      %s356 = smul.u32 2, %s21
      %s357 = smul.u32 2, %s21
      %p358 = scmp.lt.s32.totalorder %s357, 5
      %s359 = scalar_select %p358, %s357, 5
      %s360 = smul.addr %s359, 8
      %s361 = scalar_lea.vmem %s10, %s360
      %s362 = smul.u32 2, %s21
      %v363 = vld [vmem:[%s355] sm:$0xff]
      %v364 = vld [vmem:[%s355 + $0x8] sm:$0xff]
      %v365 = vld [vmem:[%s1] sm:$0xff]
      %v366 = vld [vmem:[%s1 + $0x8] sm:$0xff]
      %v367 = vld [vmem:[%s1 + $0x10] sm:$0xff]
      %v368 = vld [vmem:[%s1 + $0x18] sm:$0xff]
      %v369 = vld [vmem:[%s2] sm:$0x1]
      %v371 = vlaneseq
      %v372 = vshrl.u32 %v371, 7
      %v373 = vsub.s32 0, %v372
      %v374 = vrot.slane %v369, %v373
      %vm376 = vcmask 261120
      %v378 = vsel %vm376, %v363, 0
      %v381 = vsel %vm376, %v364, 0
      %383 = vmatprep.subr.mxu0 0.0
      %384 = vmatpush1.msra.mxu0 %v365
      %385 = vmatprep.subr.mxu0 0.0
      %386 = vmatpush1.msra.mxu0 %v366
      %387 = vmatprep.subr.mxu0 0.0
      %388 = vmatpush1.msra.mxu0 %v367
      %389 = vmatprep.subr.mxu0 0.0
      %390 = vmatpush1.msra.mxu0 %v368
      %391 = vmatprep.subr.mxu0 0.0
      %392 = vmatpush1.msra.mxu0 0.0
      %393 = vmatprep.subr.mxu0 0.0
      %394 = vmatpush1.msra.mxu0 0.0
      %395 = vmatprep.subr.mxu0 0.0
      %396 = vmatpush1.msra.mxu0 0.0
      %397 = vmatprep.subr.mxu0 0.0
      %398 = vmatpush1.msra.mxu0 0.0
      %399 = vmatprep.subr.mxu0 0.0
      %400 = vmatpush1.msra.mxu0 0.0
      %401 = vmatprep.subr.mxu0 0.0
      %402 = vmatpush1.msra.mxu0 0.0
      %403 = vmatprep.subr.mxu0 0.0
      %404 = vmatpush1.msra.mxu0 0.0
      %405 = vmatprep.subr.mxu0 0.0
      %406 = vmatpush1.msra.mxu0 0.0
      %407 = vmatprep.subr.mxu0 0.0
      %408 = vmatpush1.msra.mxu0 0.0
      %409 = vmatprep.subr.mxu0 0.0
      %410 = vmatpush1.msra.mxu0 0.0
      %411 = vmatprep.subr.mxu0 0.0
      %412 = vmatpush1.msra.mxu0 0.0
      %413 = vmatprep.subr.mxu0 0.0
      %414 = vmatpush1.msra.mxu0 0.0
      %415 = vmatprep.subr.mxu0 0.0
      %416 = vmatpush1.msra.mxu0 0.0
      %417 = vmatprep.subr.mxu0 0.0
      %418 = vmatpush1.msra.mxu0 0.0
      %419 = vmatprep.subr.mxu0 0.0
      %420 = vmatpush1.msra.mxu0 0.0
      %421 = vmatprep.subr.mxu0 0.0
      %422 = vmatpush1.msra.mxu0 0.0
      %423 = vmatprep.subr.mxu0 0.0
      %424 = vmatpush1.msra.mxu0 0.0
      %425 = vmatprep.subr.mxu0 0.0
      %426 = vmatpush1.msra.mxu0 0.0
      %427 = vmatprep.subr.mxu0 0.0
      %428 = vmatpush1.msra.mxu0 0.0
      %429 = vmatprep.subr.mxu0 0.0
      %430 = vmatpush1.msra.mxu0 0.0
      %431 = vmatprep.subr.mxu0 0.0
      %432 = vmatpush1.msra.mxu0 0.0
      %433 = vmatprep.subr.mxu0 0.0
      %434 = vmatpush1.msra.mxu0 0.0
      %435 = vmatprep.subr.mxu0 0.0
      %436 = vmatpush1.msra.mxu0 0.0
      %437 = vmatprep.subr.mxu0 0.0
      %438 = vmatpush1.msra.mxu0 0.0
      %439 = vmatprep.subr.mxu0 0.0
      %440 = vmatpush1.msra.mxu0 0.0
      %441 = vmatprep.subr.mxu0 0.0
      %442 = vmatpush1.msra.mxu0 0.0
      %443 = vmatprep.subr.mxu0 0.0
      %444 = vmatpush1.msra.mxu0 0.0
      %445 = vmatprep.subr.mxu0 0.0
      %446 = vmatpush1.msra.mxu0 0.0
      %447 = vmatprep.mubr.f32.mxu0 0.0
      %448 = vmatmul.mubr.f32.gmra.mrb[0].mxu0 %v378
      %v449 = vpop.f32.mrb[0].mxu0
      %v450 = vadd.f32 %v374, %v449
      %v451 = vpop.f32.mrb[0].mxu0
      %452 = vmatprep.mubr.f32.mxu0 0.0
      %453 = vmatmul.mubr.f32.gmra.mrb[0].mxu0 %v381
      %v454 = vpop.f32.mrb[0].mxu0
      %v455 = vadd.f32 %v374, %v454
      %v456 = vpop.f32.mrb[0].mxu0
      %457 = vdwg.mxu0
      %v458 = vmax.f32 %v450, 0.0
      %v459 = vmax.f32 %v455, 0.0
      %v460 = vld [vmem:[%s3] sm:$0xff]
      %v461 = vld [vmem:[%s3 + $0x8] sm:$0xff]
      %v462 = vld [vmem:[%s3 + $0x10] sm:$0xff]
      %v463 = vld [vmem:[%s3 + $0x18] sm:$0xff]
      %v464 = vld [vmem:[%s3 + $0x20] sm:$0xff]
      %v465 = vld [vmem:[%s3 + $0x28] sm:$0xff]
      %v466 = vld [vmem:[%s3 + $0x30] sm:$0xff]
      %v467 = vld [vmem:[%s3 + $0x38] sm:$0xff]
      %v468 = vld [vmem:[%s3 + $0x40] sm:$0xff]
      %v469 = vld [vmem:[%s3 + $0x48] sm:$0xff]
      %v470 = vld [vmem:[%s3 + $0x50] sm:$0xff]
      %v471 = vld [vmem:[%s3 + $0x58] sm:$0xff]
      %v472 = vld [vmem:[%s3 + $0x60] sm:$0xff]
      %v473 = vld [vmem:[%s3 + $0x68] sm:$0xff]
      %v474 = vld [vmem:[%s3 + $0x70] sm:$0xff]
      %v475 = vld [vmem:[%s3 + $0x78] sm:$0xff]
      %v476 = vld [vmem:[%s3 + $0x80] sm:$0xff]
      %v477 = vld [vmem:[%s3 + $0x88] sm:$0xff]
      %v478 = vld [vmem:[%s3 + $0x90] sm:$0xff]
      %v479 = vld [vmem:[%s3 + $0x98] sm:$0xff]
      %v480 = vld [vmem:[%s3 + $0xa0] sm:$0xff]
      %v481 = vld [vmem:[%s3 + $0xa8] sm:$0xff]
      %v482 = vld [vmem:[%s3 + $0xb0] sm:$0xff]
      %v483 = vld [vmem:[%s3 + $0xb8] sm:$0xff]
      %v484 = vld [vmem:[%s3 + $0xc0] sm:$0xff]
      %v485 = vld [vmem:[%s3 + $0xc8] sm:$0xff]
      %v486 = vld [vmem:[%s3 + $0xd0] sm:$0xff]
      %v487 = vld [vmem:[%s3 + $0xd8] sm:$0xff]
      %v488 = vld [vmem:[%s3 + $0xe0] sm:$0xff]
      %v489 = vld [vmem:[%s3 + $0xe8] sm:$0xff]
      %v490 = vld [vmem:[%s3 + $0xf0] sm:$0xff]
      %v491 = vld [vmem:[%s3 + $0xf8] sm:$0xff]
      %v492 = vld [vmem:[%s4] sm:$0x3]
      %v494 = vlaneseq
      %v495 = vshrl.u32 %v494, 7
      %v496 = vsub.s32 0, %v495
      %v497 = vrot.slane %v492, %v496
      %v498 = vlaneseq
      %v499 = vshrl.u32 %v498, 7
      %v500 = vsub.s32 1, %v499
      %v501 = vrot.slane %v492, %v500
      %504 = vmatprep.subr.mxu0 %v461
      %505 = vmatpush1.msra.mxu0 %v460
      %506 = vmatprep.subr.mxu0 %v463
      %507 = vmatpush1.msra.mxu0 %v462
      %508 = vmatprep.subr.mxu0 %v465
      %509 = vmatpush1.msra.mxu0 %v464
      %510 = vmatprep.subr.mxu0 %v467
      %511 = vmatpush1.msra.mxu0 %v466
      %512 = vmatprep.subr.mxu0 %v469
      %513 = vmatpush1.msra.mxu0 %v468
      %514 = vmatprep.subr.mxu0 %v471
      %515 = vmatpush1.msra.mxu0 %v470
      %516 = vmatprep.subr.mxu0 %v473
      %517 = vmatpush1.msra.mxu0 %v472
      %518 = vmatprep.subr.mxu0 %v475
      %519 = vmatpush1.msra.mxu0 %v474
      %520 = vmatprep.subr.mxu0 %v477
      %521 = vmatpush1.msra.mxu0 %v476
      %522 = vmatprep.subr.mxu0 %v479
      %523 = vmatpush1.msra.mxu0 %v478
      %524 = vmatprep.subr.mxu0 %v481
      %525 = vmatpush1.msra.mxu0 %v480
      %526 = vmatprep.subr.mxu0 %v483
      %527 = vmatpush1.msra.mxu0 %v482
      %528 = vmatprep.subr.mxu0 %v485
      %529 = vmatpush1.msra.mxu0 %v484
      %530 = vmatprep.subr.mxu0 %v487
      %531 = vmatpush1.msra.mxu0 %v486
      %532 = vmatprep.subr.mxu0 %v489
      %533 = vmatpush1.msra.mxu0 %v488
      %534 = vmatprep.subr.mxu0 %v491
      %535 = vmatpush1.msra.mxu0 %v490
      %536 = vmatprep.subr.mxu0 0.0
      %537 = vmatpush1.msra.mxu0 0.0
      %538 = vmatprep.subr.mxu0 0.0
      %539 = vmatpush1.msra.mxu0 0.0
      %540 = vmatprep.subr.mxu0 0.0
      %541 = vmatpush1.msra.mxu0 0.0
      %542 = vmatprep.subr.mxu0 0.0
      %543 = vmatpush1.msra.mxu0 0.0
      %544 = vmatprep.subr.mxu0 0.0
      %545 = vmatpush1.msra.mxu0 0.0
      %546 = vmatprep.subr.mxu0 0.0
      %547 = vmatpush1.msra.mxu0 0.0
      %548 = vmatprep.subr.mxu0 0.0
      %549 = vmatpush1.msra.mxu0 0.0
      %550 = vmatprep.subr.mxu0 0.0
      %551 = vmatpush1.msra.mxu0 0.0
      %552 = vmatprep.subr.mxu0 0.0
      %553 = vmatpush1.msra.mxu0 0.0
      %554 = vmatprep.subr.mxu0 0.0
      %555 = vmatpush1.msra.mxu0 0.0
      %556 = vmatprep.subr.mxu0 0.0
      %557 = vmatpush1.msra.mxu0 0.0
      %558 = vmatprep.subr.mxu0 0.0
      %559 = vmatpush1.msra.mxu0 0.0
      %560 = vmatprep.subr.mxu0 0.0
      %561 = vmatpush1.msra.mxu0 0.0
      %562 = vmatprep.subr.mxu0 0.0
      %563 = vmatpush1.msra.mxu0 0.0
      %564 = vmatprep.subr.mxu0 0.0
      %565 = vmatpush1.msra.mxu0 0.0
      %566 = vmatprep.subr.mxu0 0.0
      %567 = vmatpush1.msra.mxu0 0.0
      %568 = vmatprep.mubr.f32.mxu0 0.0
      %569 = vmatmul.mubr.f32.gmra.mrb[0].mxu0 %v458
      %v570 = vpop.f32.mrb[0].mxu0
      %v571 = vadd.f32 %v497, %v570
      %v572 = vpop.f32.mrb[0].mxu0
      %v573 = vadd.f32 %v501, %v572
      %574 = vmatprep.mubr.f32.mxu0 0.0
      %575 = vmatmul.mubr.f32.gmra.mrb[0].mxu0 %v459
      %v576 = vpop.f32.mrb[0].mxu0
      %v577 = vadd.f32 %v497, %v576
      %v578 = vpop.f32.mrb[0].mxu0
      %v579 = vadd.f32 %v501, %v578
      %580 = vdwg.mxu0
      %v581 = vmax.f32 %v571, 0.0
      %v582 = vmax.f32 %v573, 0.0
      %v583 = vmax.f32 %v577, 0.0
      %v584 = vmax.f32 %v579, 0.0
      %v585 = vld [vmem:[%s5] sm:$0xff]
      %v586 = vld [vmem:[%s5 + $0x8] sm:$0xff]
      %v587 = vld [vmem:[%s5 + $0x10] sm:$0xff]
      %v588 = vld [vmem:[%s5 + $0x18] sm:$0xff]
      %v589 = vld [vmem:[%s5 + $0x20] sm:$0xff]
      %v590 = vld [vmem:[%s5 + $0x28] sm:$0xff]
      %v591 = vld [vmem:[%s5 + $0x30] sm:$0xff]
      %v592 = vld [vmem:[%s5 + $0x38] sm:$0xff]
      %v593 = vld [vmem:[%s5 + $0x40] sm:$0xff]
      %v594 = vld [vmem:[%s5 + $0x48] sm:$0xff]
      %v595 = vld [vmem:[%s5 + $0x50] sm:$0xff]
      %v596 = vld [vmem:[%s5 + $0x58] sm:$0xff]
      %v597 = vld [vmem:[%s5 + $0x60] sm:$0xff]
      %v598 = vld [vmem:[%s5 + $0x68] sm:$0xff]
      %v599 = vld [vmem:[%s5 + $0x70] sm:$0xff]
      %v600 = vld [vmem:[%s5 + $0x78] sm:$0xff]
      %v601 = vld [vmem:[%s5 + $0x80] sm:$0xff]
      %v602 = vld [vmem:[%s5 + $0x88] sm:$0xff]
      %v603 = vld [vmem:[%s5 + $0x90] sm:$0xff]
      %v604 = vld [vmem:[%s5 + $0x98] sm:$0xff]
      %v605 = vld [vmem:[%s5 + $0xa0] sm:$0xff]
      %v606 = vld [vmem:[%s5 + $0xa8] sm:$0xff]
      %v607 = vld [vmem:[%s5 + $0xb0] sm:$0xff]
      %v608 = vld [vmem:[%s5 + $0xb8] sm:$0xff]
      %v609 = vld [vmem:[%s5 + $0xc0] sm:$0xff]
      %v610 = vld [vmem:[%s5 + $0xc8] sm:$0xff]
      %v611 = vld [vmem:[%s5 + $0xd0] sm:$0xff]
      %v612 = vld [vmem:[%s5 + $0xd8] sm:$0xff]
      %v613 = vld [vmem:[%s5 + $0xe0] sm:$0xff]
      %v614 = vld [vmem:[%s5 + $0xe8] sm:$0xff]
      %v615 = vld [vmem:[%s5 + $0xf0] sm:$0xff]
      %v616 = vld [vmem:[%s5 + $0xf8] sm:$0xff]
      %v617 = vld [vmem:[%s6] sm:$0x1]
      %v619 = vlaneseq
      %v620 = vshrl.u32 %v619, 7
      %v621 = vsub.s32 0, %v620
      %v622 = vrot.slane %v617, %v621
      %624 = vmatprep.subr.mxu0 0.0
      %625 = vmatpush1.msra.mxu0 %v585
      %626 = vmatprep.subr.mxu0 0.0
      %627 = vmatpush1.msra.mxu0 %v586
      %628 = vmatprep.subr.mxu0 0.0
      %629 = vmatpush1.msra.mxu0 %v587
      %630 = vmatprep.subr.mxu0 0.0
      %631 = vmatpush1.msra.mxu0 %v588
      %632 = vmatprep.subr.mxu0 0.0
      %633 = vmatpush1.msra.mxu0 %v589
      %634 = vmatprep.subr.mxu0 0.0
      %635 = vmatpush1.msra.mxu0 %v590
      %636 = vmatprep.subr.mxu0 0.0
      %637 = vmatpush1.msra.mxu0 %v591
      %638 = vmatprep.subr.mxu0 0.0
      %639 = vmatpush1.msra.mxu0 %v592
      %640 = vmatprep.subr.mxu0 0.0
      %641 = vmatpush1.msra.mxu0 %v593
      %642 = vmatprep.subr.mxu0 0.0
      %643 = vmatpush1.msra.mxu0 %v594
      %644 = vmatprep.subr.mxu0 0.0
      %645 = vmatpush1.msra.mxu0 %v595
      %646 = vmatprep.subr.mxu0 0.0
      %647 = vmatpush1.msra.mxu0 %v596
      %648 = vmatprep.subr.mxu0 0.0
      %649 = vmatpush1.msra.mxu0 %v597
      %650 = vmatprep.subr.mxu0 0.0
      %651 = vmatpush1.msra.mxu0 %v598
      %652 = vmatprep.subr.mxu0 0.0
      %653 = vmatpush1.msra.mxu0 %v599
      %654 = vmatprep.subr.mxu0 0.0
      %655 = vmatpush1.msra.mxu0 %v600
      %656 = vmatprep.subr.mxu0 0.0
      %657 = vmatpush1.msra.mxu0 %v601
      %658 = vmatprep.subr.mxu0 0.0
      %659 = vmatpush1.msra.mxu0 %v602
      %660 = vmatprep.subr.mxu0 0.0
      %661 = vmatpush1.msra.mxu0 %v603
      %662 = vmatprep.subr.mxu0 0.0
      %663 = vmatpush1.msra.mxu0 %v604
      %664 = vmatprep.subr.mxu0 0.0
      %665 = vmatpush1.msra.mxu0 %v605
      %666 = vmatprep.subr.mxu0 0.0
      %667 = vmatpush1.msra.mxu0 %v606
      %668 = vmatprep.subr.mxu0 0.0
      %669 = vmatpush1.msra.mxu0 %v607
      %670 = vmatprep.subr.mxu0 0.0
      %671 = vmatpush1.msra.mxu0 %v608
      %672 = vmatprep.subr.mxu0 0.0
      %673 = vmatpush1.msra.mxu0 %v609
      %674 = vmatprep.subr.mxu0 0.0
      %675 = vmatpush1.msra.mxu0 %v610
      %676 = vmatprep.subr.mxu0 0.0
      %677 = vmatpush1.msra.mxu0 %v611
      %678 = vmatprep.subr.mxu0 0.0
      %679 = vmatpush1.msra.mxu0 %v612
      %680 = vmatprep.subr.mxu0 0.0
      %681 = vmatpush1.msra.mxu0 %v613
      %682 = vmatprep.subr.mxu0 0.0
      %683 = vmatpush1.msra.mxu0 %v614
      %684 = vmatprep.subr.mxu0 0.0
      %685 = vmatpush1.msra.mxu0 %v615
      %686 = vmatprep.subr.mxu0 0.0
      %687 = vmatpush1.msra.mxu0 %v616
      %688 = vmatprep.mubr.f32.mxu0 %v582
      %689 = vmatmul.mubr.f32.gmra.mrb[0].mxu0 %v581
      %v690 = vpop.f32.mrb[0].mxu0
      %v691 = vadd.f32 %v622, %v690
      %v692 = vpop.f32.mrb[0].mxu0
      %693 = vmatprep.mubr.f32.mxu0 %v584
      %694 = vmatmul.mubr.f32.gmra.mrb[0].mxu0 %v583
      %v695 = vpop.f32.mrb[0].mxu0
      %v696 = vadd.f32 %v622, %v695
      %v697 = vpop.f32.mrb[0].mxu0
      %698 = vdwg.mxu0
      %v699 = vsel %vm376, %v691, -inf
      %700 = vmax.xlane.f32.xlu0 %v699
      %v701 = vpop.xlane.xlu0 %700
      %v702 = vsel %vm376, %v696, -inf
      %703 = vmax.xlane.f32.xlu0 %v702
      %v704 = vpop.xlane.xlu0 %703
      %v705 = vsub.f32 %v691, %v701
      %v706 = vsub.f32 %v696, %v704
      %v707 = vmul.f32 %v705, 1.442695
      %v708 = vpow.pop %v707
      %v709 = vmul.f32 %v706, 1.442695
      %v710 = vpow.pop %v709
      %v711 = vld [vmem:[%s7] sm:$0xff]
      %v712 = vld [vmem:[%s7 + $0x8] sm:$0xff]
      %v713 = vld [vmem:[%s7 + $0x10] sm:$0xff]
      %v714 = vld [vmem:[%s7 + $0x18] sm:$0xff]
      %v716 = vsel %vm376, %v708, 0
      %v719 = vsel %vm376, %v710, 0
      %721 = vmatprep.subr.mxu0 0.0
      %722 = vmatpush1.msra.mxu0 %v711
      %723 = vmatprep.subr.mxu0 0.0
      %724 = vmatpush1.msra.mxu0 %v712
      %725 = vmatprep.subr.mxu0 0.0
      %726 = vmatpush1.msra.mxu0 %v713
      %727 = vmatprep.subr.mxu0 0.0
      %728 = vmatpush1.msra.mxu0 %v714
      %729 = vmatprep.subr.mxu0 0.0
      %730 = vmatpush1.msra.mxu0 0.0
      %731 = vmatprep.subr.mxu0 0.0
      %732 = vmatpush1.msra.mxu0 0.0
      %733 = vmatprep.subr.mxu0 0.0
      %734 = vmatpush1.msra.mxu0 0.0
      %735 = vmatprep.subr.mxu0 0.0
      %736 = vmatpush1.msra.mxu0 0.0
      %737 = vmatprep.subr.mxu0 0.0
      %738 = vmatpush1.msra.mxu0 0.0
      %739 = vmatprep.subr.mxu0 0.0
      %740 = vmatpush1.msra.mxu0 0.0
      %741 = vmatprep.subr.mxu0 0.0
      %742 = vmatpush1.msra.mxu0 0.0
      %743 = vmatprep.subr.mxu0 0.0
      %744 = vmatpush1.msra.mxu0 0.0
      %745 = vmatprep.subr.mxu0 0.0
      %746 = vmatpush1.msra.mxu0 0.0
      %747 = vmatprep.subr.mxu0 0.0
      %748 = vmatpush1.msra.mxu0 0.0
      %749 = vmatprep.subr.mxu0 0.0
      %750 = vmatpush1.msra.mxu0 0.0
      %751 = vmatprep.subr.mxu0 0.0
      %752 = vmatpush1.msra.mxu0 0.0
      %753 = vmatprep.subr.mxu0 0.0
      %754 = vmatpush1.msra.mxu0 0.0
      %755 = vmatprep.subr.mxu0 0.0
      %756 = vmatpush1.msra.mxu0 0.0
      %757 = vmatprep.subr.mxu0 0.0
      %758 = vmatpush1.msra.mxu0 0.0
      %759 = vmatprep.subr.mxu0 0.0
      %760 = vmatpush1.msra.mxu0 0.0
      %761 = vmatprep.subr.mxu0 0.0
      %762 = vmatpush1.msra.mxu0 0.0
      %763 = vmatprep.subr.mxu0 0.0
      %764 = vmatpush1.msra.mxu0 0.0
      %765 = vmatprep.subr.mxu0 0.0
      %766 = vmatpush1.msra.mxu0 0.0
      %767 = vmatprep.subr.mxu0 0.0
      %768 = vmatpush1.msra.mxu0 0.0
      %769 = vmatprep.subr.mxu0 0.0
      %770 = vmatpush1.msra.mxu0 0.0
      %771 = vmatprep.subr.mxu0 0.0
      %772 = vmatpush1.msra.mxu0 0.0
      %773 = vmatprep.subr.mxu0 0.0
      %774 = vmatpush1.msra.mxu0 0.0
      %775 = vmatprep.subr.mxu0 0.0
      %776 = vmatpush1.msra.mxu0 0.0
      %777 = vmatprep.subr.mxu0 0.0
      %778 = vmatpush1.msra.mxu0 0.0
      %779 = vmatprep.subr.mxu0 0.0
      %780 = vmatpush1.msra.mxu0 0.0
      %781 = vmatprep.subr.mxu0 0.0
      %782 = vmatpush1.msra.mxu0 0.0
      %783 = vmatprep.subr.mxu0 0.0
      %784 = vmatpush1.msra.mxu0 0.0
      %785 = vmatprep.mubr.f32.mxu0 0.0
      %786 = vmatmul.mubr.f32.gmra.mrb[0].mxu0 %v716
      %v787 = vpop.f32.mrb[0].mxu0
      %v788 = vadd.f32 0.0, %v787
      %v789 = vpop.f32.mrb[0].mxu0
      %790 = vmatprep.mubr.f32.mxu0 0.0
      %791 = vmatmul.mubr.f32.gmra.mrb[0].mxu0 %v719
      %v792 = vpop.f32.mrb[0].mxu0
      %v793 = vadd.f32 0.0, %v792
      %v794 = vpop.f32.mrb[0].mxu0
      %795 = vdwg.mxu0
      %v796 = vld [vmem:[%s8] sm:$0xf]
      %vm797 = vcmask 31744
      %v799 = vsel %vm797, %v788, 0
      %v802 = vsel %vm797, %v793, 0
      %vm804 = vcmask 1043456
      %v806 = vsel %vm804, %v796, 0
      %808 = vmatprep.subr.mxu0 0.0
      %809 = vmatpush1.msra.mxu0 %v806
      %810 = vmatprep.subr.mxu0 0.0
      %811 = vmatpush1.msra.mxu0 0.0
      %812 = vmatprep.subr.mxu0 0.0
      %813 = vmatpush1.msra.mxu0 0.0
      %814 = vmatprep.subr.mxu0 0.0
      %815 = vmatpush1.msra.mxu0 0.0
      %816 = vmatprep.subr.mxu0 0.0
      %817 = vmatpush1.msra.mxu0 0.0
      %818 = vmatprep.subr.mxu0 0.0
      %819 = vmatpush1.msra.mxu0 0.0
      %820 = vmatprep.subr.mxu0 0.0
      %821 = vmatpush1.msra.mxu0 0.0
      %822 = vmatprep.subr.mxu0 0.0
      %823 = vmatpush1.msra.mxu0 0.0
      %824 = vmatprep.subr.mxu0 0.0
      %825 = vmatpush1.msra.mxu0 0.0
      %826 = vmatprep.subr.mxu0 0.0
      %827 = vmatpush1.msra.mxu0 0.0
      %828 = vmatprep.subr.mxu0 0.0
      %829 = vmatpush1.msra.mxu0 0.0
      %830 = vmatprep.subr.mxu0 0.0
      %831 = vmatpush1.msra.mxu0 0.0
      %832 = vmatprep.subr.mxu0 0.0
      %833 = vmatpush1.msra.mxu0 0.0
      %834 = vmatprep.subr.mxu0 0.0
      %835 = vmatpush1.msra.mxu0 0.0
      %836 = vmatprep.subr.mxu0 0.0
      %837 = vmatpush1.msra.mxu0 0.0
      %838 = vmatprep.subr.mxu0 0.0
      %839 = vmatpush1.msra.mxu0 0.0
      %840 = vmatprep.subr.mxu0 0.0
      %841 = vmatpush1.msra.mxu0 0.0
      %842 = vmatprep.subr.mxu0 0.0
      %843 = vmatpush1.msra.mxu0 0.0
      %844 = vmatprep.subr.mxu0 0.0
      %845 = vmatpush1.msra.mxu0 0.0
      %846 = vmatprep.subr.mxu0 0.0
      %847 = vmatpush1.msra.mxu0 0.0
      %848 = vmatprep.subr.mxu0 0.0
      %849 = vmatpush1.msra.mxu0 0.0
      %850 = vmatprep.subr.mxu0 0.0
      %851 = vmatpush1.msra.mxu0 0.0
      %852 = vmatprep.subr.mxu0 0.0
      %853 = vmatpush1.msra.mxu0 0.0
      %854 = vmatprep.subr.mxu0 0.0
      %855 = vmatpush1.msra.mxu0 0.0
      %856 = vmatprep.subr.mxu0 0.0
      %857 = vmatpush1.msra.mxu0 0.0
      %858 = vmatprep.subr.mxu0 0.0
      %859 = vmatpush1.msra.mxu0 0.0
      %860 = vmatprep.subr.mxu0 0.0
      %861 = vmatpush1.msra.mxu0 0.0
      %862 = vmatprep.subr.mxu0 0.0
      %863 = vmatpush1.msra.mxu0 0.0
      %864 = vmatprep.subr.mxu0 0.0
      %865 = vmatpush1.msra.mxu0 0.0
      %866 = vmatprep.subr.mxu0 0.0
      %867 = vmatpush1.msra.mxu0 0.0
      %868 = vmatprep.subr.mxu0 0.0
      %869 = vmatpush1.msra.mxu0 0.0
      %870 = vmatprep.subr.mxu0 0.0
      %871 = vmatpush1.msra.mxu0 0.0
      %872 = vmatprep.mubr.f32.mxu0 0.0
      %873 = vmatmul.mubr.f32.gmra.mrb[0].mxu0 %v799
      %v874 = vpop.f32.mrb[0].mxu0
      %v875 = vadd.f32 0.0, %v874
      %v876 = vpop.f32.mrb[0].mxu0
      %877 = vmatprep.mubr.f32.mxu0 0.0
      %878 = vmatmul.mubr.f32.gmra.mrb[0].mxu0 %v802
      %v879 = vpop.f32.mrb[0].mxu0
      %v880 = vadd.f32 0.0, %v879
      %v881 = vpop.f32.mrb[0].mxu0
      %882 = vdwg.mxu0
      %v883 = vmax.f32 %v875, 1e-30
      %v884 = vmax.f32 %v880, 1e-30
      %v885 = vrcp.pop %v883
      %v886 = vrcp.pop %v884
      %v887 = vmul.f32 %v708, %v885
      %v888 = vmul.f32 %v710, %v886
      %v889 = vmax.f32 %v887, 0.001
      %v890 = vmax.f32 %v888, 0.001
      %v891 = vld [vmem:[%s9] sm:$0xff]
      %v892 = vld [vmem:[%s9 + $0x8] sm:$0xff]
      %v893 = vld [vmem:[%s9 + $0x10] sm:$0xff]
      %v894 = vld [vmem:[%s9 + $0x18] sm:$0xff]
      %v896 = vsel %vm376, %v889, 0
      %v899 = vsel %vm376, %v890, 0
      %901 = vmatprep.subr.mxu0 0.0
      %902 = vmatpush1.msra.mxu0 %v891
      %903 = vmatprep.subr.mxu0 0.0
      %904 = vmatpush1.msra.mxu0 %v892
      %905 = vmatprep.subr.mxu0 0.0
      %906 = vmatpush1.msra.mxu0 %v893
      %907 = vmatprep.subr.mxu0 0.0
      %908 = vmatpush1.msra.mxu0 %v894
      %909 = vmatprep.subr.mxu0 0.0
      %910 = vmatpush1.msra.mxu0 0.0
      %911 = vmatprep.subr.mxu0 0.0
      %912 = vmatpush1.msra.mxu0 0.0
      %913 = vmatprep.subr.mxu0 0.0
      %914 = vmatpush1.msra.mxu0 0.0
      %915 = vmatprep.subr.mxu0 0.0
      %916 = vmatpush1.msra.mxu0 0.0
      %917 = vmatprep.subr.mxu0 0.0
      %918 = vmatpush1.msra.mxu0 0.0
      %919 = vmatprep.subr.mxu0 0.0
      %920 = vmatpush1.msra.mxu0 0.0
      %921 = vmatprep.subr.mxu0 0.0
      %922 = vmatpush1.msra.mxu0 0.0
      %923 = vmatprep.subr.mxu0 0.0
      %924 = vmatpush1.msra.mxu0 0.0
      %925 = vmatprep.subr.mxu0 0.0
      %926 = vmatpush1.msra.mxu0 0.0
      %927 = vmatprep.subr.mxu0 0.0
      %928 = vmatpush1.msra.mxu0 0.0
      %929 = vmatprep.subr.mxu0 0.0
      %930 = vmatpush1.msra.mxu0 0.0
      %931 = vmatprep.subr.mxu0 0.0
      %932 = vmatpush1.msra.mxu0 0.0
      %933 = vmatprep.subr.mxu0 0.0
      %934 = vmatpush1.msra.mxu0 0.0
      %935 = vmatprep.subr.mxu0 0.0
      %936 = vmatpush1.msra.mxu0 0.0
      %937 = vmatprep.subr.mxu0 0.0
      %938 = vmatpush1.msra.mxu0 0.0
      %939 = vmatprep.subr.mxu0 0.0
      %940 = vmatpush1.msra.mxu0 0.0
      %941 = vmatprep.subr.mxu0 0.0
      %942 = vmatpush1.msra.mxu0 0.0
      %943 = vmatprep.subr.mxu0 0.0
      %944 = vmatpush1.msra.mxu0 0.0
      %945 = vmatprep.subr.mxu0 0.0
      %946 = vmatpush1.msra.mxu0 0.0
      %947 = vmatprep.subr.mxu0 0.0
      %948 = vmatpush1.msra.mxu0 0.0
      %949 = vmatprep.subr.mxu0 0.0
      %950 = vmatpush1.msra.mxu0 0.0
      %951 = vmatprep.subr.mxu0 0.0
      %952 = vmatpush1.msra.mxu0 0.0
      %953 = vmatprep.subr.mxu0 0.0
      %954 = vmatpush1.msra.mxu0 0.0
      %955 = vmatprep.subr.mxu0 0.0
      %956 = vmatpush1.msra.mxu0 0.0
      %957 = vmatprep.subr.mxu0 0.0
      %958 = vmatpush1.msra.mxu0 0.0
      %959 = vmatprep.subr.mxu0 0.0
      %960 = vmatpush1.msra.mxu0 0.0
      %961 = vmatprep.subr.mxu0 0.0
      %962 = vmatpush1.msra.mxu0 0.0
      %963 = vmatprep.subr.mxu0 0.0
      %964 = vmatpush1.msra.mxu0 0.0
      %965 = vmatprep.mubr.f32.mxu0 0.0
      %966 = vmatmul.mubr.f32.gmra.mrb[0].mxu0 %v896
      %v967 = vpop.f32.mrb[0].mxu0
      %v968 = vadd.f32 0.0, %v967
      %v969 = vpop.f32.mrb[0].mxu0
      %970 = vmatprep.mubr.f32.mxu0 0.0
      %971 = vmatmul.mubr.f32.gmra.mrb[0].mxu0 %v899
      %v972 = vpop.f32.mrb[0].mxu0
      %v973 = vadd.f32 0.0, %v972
      %v974 = vpop.f32.mrb[0].mxu0
      %975 = vdwg.mxu0
      %976 = vst.msk [vmem:[%s361] sm:$0xff] %vm797, %v968
      %977 = vst.msk [vmem:[%s361 + $0x8] sm:$0xff] %vm797, %v973
      %s978 = smul.u32 2, %s21
      %p979 = scmp.lt.s32.totalorder %s978, 5
      %s980 = scalar_select %p979, %s978, 5
      %s981 = smul.addr %s980, 8
      %s982 = scalar_lea.vmem %s10, %s981
      // Predicated region
      $region61: #{network_forward.1} parent=59 // pred_check
        %p983 = pneg %p254
      $region62: #{network_forward.1} parent=59 // pred_check_branch
        %985 = sbr.rel (%p983) target = $region64
      $region63: #{network_forward.1} parent=59 // pred_region
        %s986 = smul.u32 2, %s21
      $region64: #{network_forward.1} parent=59 // pred_fallthru
        _
    $region60: #{network_forward.1} parent=5 // pred_fallthru
      _
    %p987 = scmp.le.s32.totalorder 2, %s16
    // Predicated region
    $region65: #{network_forward.1} parent=5 // pred_check
      %p988 = pneg %p987
    $region66: #{network_forward.1} parent=5 // pred_check_branch
      %990 = sbr.rel (%p988) target = $region68
    $region67: #{network_forward.1} parent=5 // pred_region
      %s991 = ssub.s32 %s16, 2
      // Predicated region
      $region69: #{network_forward.1} parent=67 // pred_check
        %p992 = pneg %p260
      $region70: #{network_forward.1} parent=67 // pred_check_branch
        %994 = sbr.rel (%p992) target = $region72
      $region71: #{network_forward.1} parent=67 // pred_region
        %s995 = smul.u32 2, %s22
        %p996 = scmp.lt.s32.totalorder %s995, 5
        %s997 = scalar_select %p996, %s995, 5
        %s998 = smul.addr %s997, 8
        %s999 = scalar_lea.vmem %s10, %s998
      $region72: #{network_forward.1} parent=67 // pred_fallthru
        _
    $region68: #{network_forward.1} parent=5 // pred_fallthru
      _
  $region6: #{network_forward.1} parent=0 // loop_footer
    %s20 = sadd.s32 1, %s16
  $region7: #{network_forward.1} parent=0 // loop_footer_branch
    %15 = sbr.rel target = $region3
  $region8: #{network_forward.1} parent=0 // loop_exit
    _

</llo_original>
